<compile_context>
chip_gen: v7x
topology: tpu7x:2x2x1
jax: 0.10.0
libtpu: 0.0.40
codegen_flags: <defaults>
</compile_context>

<pallas_src>
import numpy as np

import jax
import jax.numpy as jnp
from jax import lax
from jax.experimental import pallas as pl
from jax.experimental.pallas import tpu as pltpu


def _round_up(x, m):
    return ((x + m - 1) // m) * m


def _apply_act(name, x):
    if name == "tanh":
        return jnp.tanh(x)
    if name == "sigmoid":
        return jax.nn.sigmoid(x)
    return x  # "linear"


def _choose_atom_tile(max_atoms, d_in, p, n_layers, s_pad, budget_bytes=24 << 20):
    """Atom-tile size that keeps the double-buffered working set well under VMEM
    on every generation (v7x: 64 MiB physical / 32 MiB default scoped)."""
    ta = min(512, _round_up(max_atoms, 8))

    def usage(t):
        per_tile = t * (d_in + 1 + 2 * p + s_pad) * 4            # inputs + temps + mask
        weights = (d_in * p + max(n_layers - 1, 1) * p * p + n_layers * p) * 4
        return 2 * per_tile + 2 * weights + 2 * s_pad * 4

    while ta > 8 and usage(ta) > budget_bytes:
        ta = _round_up(max(ta // 2, 8), 8)
    return ta


def _make_kernel(n_sp, layer_counts, act_names, ta, s_pad, use_bf16):
    """Fused kernel: statically-unswitched per-species MLP + masked struct reduce."""

    def kernel(descrp_ref, sid_ref, w0_ref, w_ref, b_ref, e_ref):
        # descrp_ref: VMEM (TA, D_in)        descriptors (real feature width)
        # sid_ref   : VMEM (TA, 1) int32     per-atom structure index (-1 = padding)
        # w0_ref    : VMEM (D_in, P)         first-layer weight of current species
        # w_ref     : VMEM (L-1, P, P)       remaining stacked weights
        # b_ref     : VMEM (L, 1, P)         stacked biases
        # e_ref     : VMEM (1, S_pad)        per-species partial structure energies
        t = pl.program_id(1)     # atom-tile axis ("arbitrary" -> resident accumulator)
        s = pl.program_id(0)     # species axis   ("parallel"  -> megacore)

        @pl.when(t == 0)
        def _init():
            e_ref[...] = jnp.zeros_like(e_ref)

        # Rebuild the one-hot structure mask in-kernel from the int32 index
        # (replaces streaming a dense (A, S) f32 logic matrix from HBM).
        sid = sid_ref[...]                                            # (TA, 1)
        lane = lax.broadcasted_iota(jnp.int32, (ta, s_pad), 1)
        mask = sid == lane                                            # padded atoms never match

        for i in range(n_sp):
            def _species_body(i=i):
                nt = layer_counts[i]       # true layer count for this species
                acts = act_names[i]        # static activation names (len nt-1)
                x = descrp_ref[...]
                y = jnp.dot(x, w0_ref[...],
                            preferred_element_type=jnp.float32) + b_ref[0]
                if nt > 1:
                    y = _apply_act(acts[0], y)
                    for l in range(1, nt):
                        lhs = y.astype(jnp.bfloat16) if use_bf16 else y
                        y = jnp.dot(lhs, w_ref[l - 1],
                                    preferred_element_type=jnp.float32) + b_ref[l]
                        if l < nt - 1:
                            y = _apply_act(acts[l], y)
                # Only lane 0 of the padded output carries the atomic energy.
                atomic_e = y[:, :1]                                   # (TA, 1)
                e_ref[...] += jnp.sum(
                    jnp.where(mask, atomic_e, jnp.float32(0.0)),
                    axis=0, keepdims=True)

            pl.when(s == i)(_species_body)

    return kernel


class NetAtomPallas:
    """JAX/Pallas port of NetAtom (energy forward pass, all species fused)."""

    def __init__(self, input_size, hidden_size, species, active_names, key,
                 use_bf16_matmul=False):
        self.input_size = list(input_size)
        self.hidden_size = [list(h) for h in hidden_size]
        self.species = list(species)
        self.active_names = [list(a) for a in active_names]
        self.use_bf16_matmul = use_bf16_matmul
        n_sp = len(species)

        self.layer_counts = [len(self.hidden_size[i]) + 1 for i in range(n_sp)]
        self.n_layers = max(self.layer_counts)                       # L
        self.d_in_p = _round_up(max(self.input_size), 8)             # real-ish feature width
        max_hidden = max(max(h) for h in self.hidden_size)
        self.padded_width = _round_up(max(max_hidden, 1), 128)       # P (hidden/out lanes)

        # nn.Linear-style init; weights stored (D_in, D_out) so kernel does x @ W + b.
        self.params = []
        for i in range(n_sp):
            dims = [self.input_size[i]] + self.hidden_size[i] + [1]
            layer_params = []
            for l in range(len(dims) - 1):
                key, kw, kb = jax.random.split(key, 3)
                bound = 1.0 / (dims[l] ** 0.5)
                w = jax.random.uniform(
                    kw, (dims[l], dims[l + 1]), jnp.float32, -bound, bound)
                b = jax.random.uniform(
                    kb, (1, dims[l + 1]), jnp.float32, -bound, bound)
                layer_params.append((w, b))
            self.params.append(layer_params)

        # ---- pack parameters ONCE (zero-padded; padding rows/cols keep results exact)
        P, L, D = self.padded_width, self.n_layers, self.d_in_p
        w0 = np.zeros((n_sp, D, P), np.float32)
        wr = np.zeros((n_sp, max(L - 1, 1), P, P), np.float32)
        bb = np.zeros((n_sp, L, 1, P), np.float32)
        for i in range(n_sp):
            dims = [self.input_size[i]] + self.hidden_size[i] + [1]
            for l in range(len(dims) - 1):
                w, b = self.params[i][l]
                w = np.asarray(w, np.float32)
                b = np.asarray(b, np.float32)
                if l == 0:
                    w0[i, :dims[0], :dims[1]] = w
                else:
                    wr[i, l - 1, :dims[l], :dims[l + 1]] = w
                bb[i, l, 0, :dims[l + 1]] = b[0]
        w_dtype = jnp.bfloat16 if use_bf16_matmul else jnp.float32
        self.in_dtype = w_dtype                 # descriptor dtype (pre-cast in HBM)
        self.w0_all = jnp.asarray(w0, w_dtype)
        self.w_rest_all = jnp.asarray(wr, w_dtype)
        self.b_all = jnp.asarray(bb, jnp.float32)
        self._call_cache = {}

    # ----------------------------------------------------------------- packing
    def pack_inputs(self, grp_descrp, logic_reduce):
        """Pad/stack inputs + extract per-atom structure indices (once per geometry)."""
        n_sp = len(self.species)
        n_struct = int(logic_reduce[0].shape[0])
        s_pad = _round_up(n_struct, 128)
        max_atoms = max(int(d.shape[0]) for d in grp_descrp)
        ta = _choose_atom_tile(max_atoms, self.d_in_p, self.padded_width,
                               self.n_layers, s_pad)
        a_pad = _round_up(max_atoms, ta)

        descrp_all = jnp.zeros((n_sp, a_pad, self.d_in_p), self.in_dtype)
        sid_all = jnp.full((n_sp, a_pad, 1), -1, jnp.int32)
        for i in range(n_sp):
            na = int(grp_descrp[i].shape[0])
            din = self.input_size[i]
            descrp_all = descrp_all.at[i, :na, :din].set(
                grp_descrp[i].astype(self.in_dtype))
            lr = jnp.asarray(logic_reduce[i], jnp.float32)
            # logic_reduce is a one-hot structure-membership matrix; atoms whose
            # column is all-zero map to -1 and are masked out in-kernel.
            sid = jnp.argmax(lr, axis=0).astype(jnp.int32)
            sid = jnp.where(jnp.sum(lr, axis=0) > 0, sid, -1)
            sid_all = sid_all.at[i, :na, 0].set(sid)
        return descrp_all, sid_all, n_struct, ta

    def _get_call(self, a_pad, s_pad, ta):
        key = (a_pad, s_pad, ta)
        if key in self._call_cache:
            return self._call_cache[key]
        n_sp = len(self.species)
        P, L, D = self.padded_width, self.n_layers, self.d_in_p
        kernel = _make_kernel(n_sp, self.layer_counts, self.active_names,
                              ta, s_pad, self.use_bf16_matmul)
        grid_spec = pltpu.PrefetchScalarGridSpec(
            num_scalar_prefetch=0,
            grid=(n_sp, a_pad // ta),
            in_specs=[
                # atom-tiled streams
                pl.BlockSpec((None, ta, D), lambda s, t: (s, t, 0)),
                pl.BlockSpec((None, ta, 1), lambda s, t: (s, t, 0)),
                # weights/biases: index_map ignores the atom-tile index -> resident
                pl.BlockSpec((None, D, P), lambda s, t: (s, 0, 0)),
                pl.BlockSpec((None, max(L - 1, 1), P, P), lambda s, t: (s, 0, 0, 0)),
                pl.BlockSpec((None, L, 1, P), lambda s, t: (s, 0, 0, 0)),
            ],
            # Per-species partial-energy row, resident across the atom-tile axis.
            out_specs=pl.BlockSpec((None, 1, s_pad), lambda s, t: (s, 0, 0)),
        )
        call = pl.pallas_call(
            kernel,
            out_shape=jax.ShapeDtypeStruct((n_sp, 1, s_pad), jnp.float32),
            grid_spec=grid_spec,
            compiler_params=pltpu.CompilerParams(
                dimension_semantics=("parallel", "arbitrary")),
        )
        call = jax.jit(call)
        self._call_cache[key] = call
        return call

    # ----------------------------------------------------------------- forward
    def forward_packed(self, descrp_all, sid_all, n_struct, ta):
        n_sp, a_pad, _ = descrp_all.shape
        s_pad = _round_up(n_struct, 128)
        call = self._get_call(a_pad, s_pad, ta)
        e_partial = call(descrp_all, sid_all,
                         self.w0_all, self.w_rest_all, self.b_all)
        # tiny wrapper-side reduction over species rows (unlocks megacore)
        return jnp.sum(e_partial[:, 0, :n_struct], axis=0)

    def forward(self, grp_descrp, logic_reduce):
        packed = self.pack_inputs(grp_descrp, logic_reduce)
        return self.forward_packed(*packed)

    # pure-JAX reference (no Pallas) for a correctness check
    def forward_ref(self, grp_descrp, logic_reduce):
        n_struct = logic_reduce[0].shape[0]
        list_E_ann = jnp.zeros((n_struct,), jnp.float32)
        for iesp in range(len(self.species)):
            x = grp_descrp[iesp].astype(jnp.float32)
            n_layers = len(self.params[iesp])
            for l, (w, b) in enumerate(self.params[iesp]):
                x = x @ w + b
                if l < n_layers - 1:
                    act = self.active_names[iesp][l]
                    if act == "tanh":
                        x = jnp.tanh(x)
                    elif act == "sigmoid":
                        x = jax.nn.sigmoid(x)
            list_E_ann = list_E_ann + jnp.einsum("ij,ki->k", x, logic_reduce[iesp])
        return list_E_ann


if __name__ == "__main__":
    key = jax.random.PRNGKey(0)

    species = ["A", "B"]
    input_size = [16, 16]
    hidden_size = [[32, 32], [32, 16]]
    active_names = [["tanh", "tanh"], ["sigmoid", "tanh"]]
    n_atoms = [24, 16]
    n_struct = 4

    key, k1, k2, kparams = jax.random.split(key, 4)
    grp_descrp = [
        jax.random.normal(k1, (n_atoms[0], input_size[0]), jnp.float32),
        jax.random.normal(k2, (n_atoms[1], input_size[1]), jnp.float32),
    ]
    # one-hot structure-membership matrices (atoms assigned round-robin)
    logic_reduce = []
    for na in n_atoms:
        assign = jnp.arange(na) % n_struct
        logic_reduce.append(
            (assign[None, :] == jnp.arange(n_struct)[:, None]).astype(jnp.float32)
        )

    net = NetAtomPallas(input_size, hidden_size, species, active_names, kparams)

    list_E_ann = net.forward(grp_descrp, logic_reduce)
    jax.block_until_ready(list_E_ann)

    ref = net.forward_ref(grp_descrp, logic_reduce)
    if not bool(jnp.allclose(list_E_ann, ref, atol=1e-4, rtol=1e-4)):
        raise AssertionError(f"mismatch: pallas={list_E_ann} ref={ref}")

    print("KERNEL_OK")
</pallas_src>

<mosaic_0001>
module attributes {stable_mosaic.version = 11 : i64} {
  func.func @kernel(%arg0: i32, %arg1: i32, %arg2: memref<1x24x16xf32, #tpu.memory_space<vmem>>, %arg3: memref<1x24x1xi32, #tpu.memory_space<vmem>>, %arg4: memref<1x16x128xf32, #tpu.memory_space<vmem>>, %arg5: memref<1x2x128x128xf32, #tpu.memory_space<vmem>>, %arg6: memref<1x3x1x128xf32, #tpu.memory_space<vmem>>, %arg7: memref<1x1x128xf32, #tpu.memory_space<vmem>>) attributes {dimension_semantics = [#tpu.dimension_semantics<parallel>, #tpu.dimension_semantics<arbitrary>], iteration_bounds = array<i64: 2, 1>, scalar_prefetch = 0 : i64, scratch_operands = 0 : i64, tpu.core_type = #tpu.core_type<tc>, window_params = [{transform_indices = @transform_0, window_bounds = array<i64: 1, 24, 16>}, {transform_indices = @transform_1, window_bounds = array<i64: 1, 24, 1>}, {transform_indices = @transform_2, window_bounds = array<i64: 1, 16, 128>}, {transform_indices = @transform_3, window_bounds = array<i64: 1, 2, 128, 128>}, {transform_indices = @transform_4, window_bounds = array<i64: 1, 3, 1, 128>}, {transform_indices = @transform_5, window_bounds = array<i64: 1, 1, 128>}]} {
    %c0_i32 = arith.constant 0 : i32
    %0 = arith.cmpi eq, %arg1, %c0_i32 : i32
    %1 = arith.extui %0 : i1 to i32
    %c0_i32_0 = arith.constant 0 : i32
    %2 = arith.cmpi ne, %1, %c0_i32_0 : i32
    scf.if %2 {
      %cst = arith.constant 0.000000e+00 : f32
      %14 = vector.broadcast %cst : f32 to vector<1x128xf32>
      %c0_6 = arith.constant 0 : index
      %c0_7 = arith.constant 0 : index
      %c0_8 = arith.constant 0 : index
      %15 = vector.load %arg7[%c0_6, %c0_7, %c0_8] : memref<1x1x128xf32, #tpu.memory_space<vmem>>, vector<1x1x128xf32>
      %16 = vector.shape_cast %15 : vector<1x1x128xf32> to vector<1x128xf32>
      %17 = vector.shape_cast %14 : vector<1x128xf32> to vector<1x1x128xf32>
      tpu.vector_store %arg7[%c0_6, %c0_7, %c0_8], %17 {strides = array<i32>} : memref<1x1x128xf32, #tpu.memory_space<vmem>>, vector<1x1x128xf32>,
    } else {
    }
    %c0 = arith.constant 0 : index
    %c0_1 = arith.constant 0 : index
    %c0_2 = arith.constant 0 : index
    %3 = vector.load %arg3[%c0, %c0_1, %c0_2] : memref<1x24x1xi32, #tpu.memory_space<vmem>>, vector<1x24x1xi32>
    %4 = vector.shape_cast %3 : vector<1x24x1xi32> to vector<24x1xi32>
    %5 = tpu.iota {dimensions = array<i32: 1>} : vector<24x128xi32>
    %6 = vector.broadcast %4 : vector<24x1xi32> to vector<24x128xi32>
    %7 = arith.cmpi eq, %6, %5 : vector<24x128xi32>
    %c0_i32_3 = arith.constant 0 : i32
    %8 = arith.cmpi eq, %arg0, %c0_i32_3 : i32
    %9 = arith.extui %8 : i1 to i32
    %c0_i32_4 = arith.constant 0 : i32
    %10 = arith.cmpi ne, %9, %c0_i32_4 : i32
    scf.if %10 {
      %c0_6 = arith.constant 0 : index
      %c0_7 = arith.constant 0 : index
      %c0_8 = arith.constant 0 : index
      %14 = vector.load %arg2[%c0_6, %c0_7, %c0_8] : memref<1x24x16xf32, #tpu.memory_space<vmem>>, vector<1x24x16xf32>
      %15 = vector.shape_cast %14 : vector<1x24x16xf32> to vector<24x16xf32>
      %c0_9 = arith.constant 0 : index
      %c0_10 = arith.constant 0 : index
      %c0_11 = arith.constant 0 : index
      %16 = vector.load %arg4[%c0_9, %c0_10, %c0_11] : memref<1x16x128xf32, #tpu.memory_space<vmem>>, vector<1x16x128xf32>
      %17 = vector.shape_cast %16 : vector<1x16x128xf32> to vector<16x128xf32>
      %cst = arith.constant dense<0.000000e+00> : vector<24x128xf32>
      %18 = tpu.matmul %15, %17, %cst {dimension_numbers = #tpu.dot_dimension_numbers<[1], [0], [0], [1], [0, 0, 1, 1], [], []>} : vector<24x16xf32>, vector<16x128xf32>, vector<24x128xf32> -> vector<24x128xf32>
      %c0_12 = arith.constant 0 : index
      %c0_13 = arith.constant 0 : index
      %c0_14 = arith.constant 0 : index
      %c0_15 = arith.constant 0 : index
      %19 = vector.load %arg6[%c0_12, %c0_13, %c0_14, %c0_15] : memref<1x3x1x128xf32, #tpu.memory_space<vmem>>, vector<1x1x1x128xf32>
      %20 = vector.shape_cast %19 : vector<1x1x1x128xf32> to vector<1x128xf32>
      %21 = vector.broadcast %20 : vector<1x128xf32> to vector<24x128xf32>
      %22 = arith.addf %18, %21 : vector<24x128xf32>
      %23 = math.tanh %22 : vector<24x128xf32>
      %c0_16 = arith.constant 0 : index
      %c0_17 = arith.constant 0 : index
      %c0_18 = arith.constant 0 : index
      %c0_19 = arith.constant 0 : index
      %24 = vector.load %arg5[%c0_16, %c0_17, %c0_18, %c0_19] : memref<1x2x128x128xf32, #tpu.memory_space<vmem>>, vector<1x1x128x128xf32>
      %25 = vector.shape_cast %24 : vector<1x1x128x128xf32> to vector<128x128xf32>
      %cst_20 = arith.constant dense<0.000000e+00> : vector<24x128xf32>
      %26 = tpu.matmul %23, %25, %cst_20 {dimension_numbers = #tpu.dot_dimension_numbers<[1], [0], [0], [1], [0, 0, 1, 1], [], []>} : vector<24x128xf32>, vector<128x128xf32>, vector<24x128xf32> -> vector<24x128xf32>
      %c0_21 = arith.constant 0 : index
      %c1 = arith.constant 1 : index
      %c0_22 = arith.constant 0 : index
      %c0_23 = arith.constant 0 : index
      %27 = vector.load %arg6[%c0_21, %c1, %c0_22, %c0_23] : memref<1x3x1x128xf32, #tpu.memory_space<vmem>>, vector<1x1x1x128xf32>
      %28 = vector.shape_cast %27 : vector<1x1x1x128xf32> to vector<1x128xf32>
      %29 = vector.broadcast %28 : vector<1x128xf32> to vector<24x128xf32>
      %30 = arith.addf %26, %29 : vector<24x128xf32>
      %31 = math.tanh %30 : vector<24x128xf32>
      %c0_24 = arith.constant 0 : index
      %c1_25 = arith.constant 1 : index
      %c0_26 = arith.constant 0 : index
      %c0_27 = arith.constant 0 : index
      %32 = vector.load %arg5[%c0_24, %c1_25, %c0_26, %c0_27] : memref<1x2x128x128xf32, #tpu.memory_space<vmem>>, vector<1x1x128x128xf32>
      %33 = vector.shape_cast %32 : vector<1x1x128x128xf32> to vector<128x128xf32>
      %cst_28 = arith.constant dense<0.000000e+00> : vector<24x128xf32>
      %34 = tpu.matmul %31, %33, %cst_28 {dimension_numbers = #tpu.dot_dimension_numbers<[1], [0], [0], [1], [0, 0, 1, 1], [], []>} : vector<24x128xf32>, vector<128x128xf32>, vector<24x128xf32> -> vector<24x128xf32>
      %c0_29 = arith.constant 0 : index
      %c2 = arith.constant 2 : index
      %c0_30 = arith.constant 0 : index
      %c0_31 = arith.constant 0 : index
      %35 = vector.load %arg6[%c0_29, %c2, %c0_30, %c0_31] : memref<1x3x1x128xf32, #tpu.memory_space<vmem>>, vector<1x1x1x128xf32>
      %36 = vector.shape_cast %35 : vector<1x1x1x128xf32> to vector<1x128xf32>
      %37 = vector.broadcast %36 : vector<1x128xf32> to vector<24x128xf32>
      %38 = arith.addf %34, %37 : vector<24x128xf32>
      %39 = vector.extract_strided_slice %38 {offsets = [0, 0], sizes = [24, 1], strides = [1, 1]} : vector<24x128xf32> to vector<24x1xf32>
      %c0_32 = arith.constant 0 : index
      %c0_33 = arith.constant 0 : index
      %c0_34 = arith.constant 0 : index
      %40 = vector.load %arg7[%c0_32, %c0_33, %c0_34] : memref<1x1x128xf32, #tpu.memory_space<vmem>>, vector<1x1x128xf32>
      %41 = vector.shape_cast %40 : vector<1x1x128xf32> to vector<1x128xf32>
      %cst_35 = arith.constant 0.000000e+00 : f32
      %42 = vector.shape_cast %39 : vector<24x1xf32> to vector<24x1xf32>
      %43 = vector.broadcast %42 : vector<24x1xf32> to vector<24x128xf32>
      %44 = vector.broadcast %cst_35 : f32 to vector<24x128xf32>
      %45 = arith.select %7, %43, %44 : vector<24x128xi1>, vector<24x128xf32>
      %cst_36 = arith.constant dense<0.000000e+00> : vector<128xf32>
      %46 = vector.multi_reduction <add>, %45, %cst_36 [0] : vector<24x128xf32> to vector<128xf32>
      %47 = vector.shape_cast %46 : vector<128xf32> to vector<1x128xf32>
      %48 = arith.addf %41, %47 : vector<1x128xf32>
      %c0_37 = arith.constant 0 : index
      %c0_38 = arith.constant 0 : index
      %c0_39 = arith.constant 0 : index
      %49 = vector.load %arg7[%c0_37, %c0_38, %c0_39] : memref<1x1x128xf32, #tpu.memory_space<vmem>>, vector<1x1x128xf32>
      %50 = vector.shape_cast %49 : vector<1x1x128xf32> to vector<1x128xf32>
      %51 = vector.shape_cast %48 : vector<1x128xf32> to vector<1x1x128xf32>
      tpu.vector_store %arg7[%c0_37, %c0_38, %c0_39], %51 {strides = array<i32>} : memref<1x1x128xf32, #tpu.memory_space<vmem>>, vector<1x1x128xf32>,
    } else {
    }
    %c1_i32 = arith.constant 1 : i32
    %11 = arith.cmpi eq, %arg0, %c1_i32 : i32
    %12 = arith.extui %11 : i1 to i32
    %c0_i32_5 = arith.constant 0 : i32
    %13 = arith.cmpi ne, %12, %c0_i32_5 : i32
    scf.if %13 {
      %c0_6 = arith.constant 0 : index
      %c0_7 = arith.constant 0 : index
      %c0_8 = arith.constant 0 : index
      %14 = vector.load %arg2[%c0_6, %c0_7, %c0_8] : memref<1x24x16xf32, #tpu.memory_space<vmem>>, vector<1x24x16xf32>
      %15 = vector.shape_cast %14 : vector<1x24x16xf32> to vector<24x16xf32>
      %c0_9 = arith.constant 0 : index
      %c0_10 = arith.constant 0 : index
      %c0_11 = arith.constant 0 : index
      %16 = vector.load %arg4[%c0_9, %c0_10, %c0_11] : memref<1x16x128xf32, #tpu.memory_space<vmem>>, vector<1x16x128xf32>
      %17 = vector.shape_cast %16 : vector<1x16x128xf32> to vector<16x128xf32>
      %cst = arith.constant dense<0.000000e+00> : vector<24x128xf32>
      %18 = tpu.matmul %15, %17, %cst {dimension_numbers = #tpu.dot_dimension_numbers<[1], [0], [0], [1], [0, 0, 1, 1], [], []>} : vector<24x16xf32>, vector<16x128xf32>, vector<24x128xf32> -> vector<24x128xf32>
      %c0_12 = arith.constant 0 : index
      %c0_13 = arith.constant 0 : index
      %c0_14 = arith.constant 0 : index
      %c0_15 = arith.constant 0 : index
      %19 = vector.load %arg6[%c0_12, %c0_13, %c0_14, %c0_15] : memref<1x3x1x128xf32, #tpu.memory_space<vmem>>, vector<1x1x1x128xf32>
      %20 = vector.shape_cast %19 : vector<1x1x1x128xf32> to vector<1x128xf32>
      %21 = vector.broadcast %20 : vector<1x128xf32> to vector<24x128xf32>
      %22 = arith.addf %18, %21 : vector<24x128xf32>
      %23 = arith.negf %22 : vector<24x128xf32>
      %24 = math.exp %23 : vector<24x128xf32>
      %cst_16 = arith.constant 1.000000e+00 : f32
      %25 = vector.broadcast %cst_16 : f32 to vector<24x128xf32>
      %26 = arith.addf %25, %24 : vector<24x128xf32>
      %27 = arith.divf %25, %26 : vector<24x128xf32>
      %c0_17 = arith.constant 0 : index
      %c0_18 = arith.constant 0 : index
      %c0_19 = arith.constant 0 : index
      %c0_20 = arith.constant 0 : index
      %28 = vector.load %arg5[%c0_17, %c0_18, %c0_19, %c0_20] : memref<1x2x128x128xf32, #tpu.memory_space<vmem>>, vector<1x1x128x128xf32>
      %29 = vector.shape_cast %28 : vector<1x1x128x128xf32> to vector<128x128xf32>
      %cst_21 = arith.constant dense<0.000000e+00> : vector<24x128xf32>
      %30 = tpu.matmul %27, %29, %cst_21 {dimension_numbers = #tpu.dot_dimension_numbers<[1], [0], [0], [1], [0, 0, 1, 1], [], []>} : vector<24x128xf32>, vector<128x128xf32>, vector<24x128xf32> -> vector<24x128xf32>
      %c0_22 = arith.constant 0 : index
      %c1 = arith.constant 1 : index
      %c0_23 = arith.constant 0 : index
      %c0_24 = arith.constant 0 : index
      %31 = vector.load %arg6[%c0_22, %c1, %c0_23, %c0_24] : memref<1x3x1x128xf32, #tpu.memory_space<vmem>>, vector<1x1x1x128xf32>
      %32 = vector.shape_cast %31 : vector<1x1x1x128xf32> to vector<1x128xf32>
      %33 = vector.broadcast %32 : vector<1x128xf32> to vector<24x128xf32>
      %34 = arith.addf %30, %33 : vector<24x128xf32>
      %35 = math.tanh %34 : vector<24x128xf32>
      %c0_25 = arith.constant 0 : index
      %c1_26 = arith.constant 1 : index
      %c0_27 = arith.constant 0 : index
      %c0_28 = arith.constant 0 : index
      %36 = vector.load %arg5[%c0_25, %c1_26, %c0_27, %c0_28] : memref<1x2x128x128xf32, #tpu.memory_space<vmem>>, vector<1x1x128x128xf32>
      %37 = vector.shape_cast %36 : vector<1x1x128x128xf32> to vector<128x128xf32>
      %cst_29 = arith.constant dense<0.000000e+00> : vector<24x128xf32>
      %38 = tpu.matmul %35, %37, %cst_29 {dimension_numbers = #tpu.dot_dimension_numbers<[1], [0], [0], [1], [0, 0, 1, 1], [], []>} : vector<24x128xf32>, vector<128x128xf32>, vector<24x128xf32> -> vector<24x128xf32>
      %c0_30 = arith.constant 0 : index
      %c2 = arith.constant 2 : index
      %c0_31 = arith.constant 0 : index
      %c0_32 = arith.constant 0 : index
      %39 = vector.load %arg6[%c0_30, %c2, %c0_31, %c0_32] : memref<1x3x1x128xf32, #tpu.memory_space<vmem>>, vector<1x1x1x128xf32>
      %40 = vector.shape_cast %39 : vector<1x1x1x128xf32> to vector<1x128xf32>
      %41 = vector.broadcast %40 : vector<1x128xf32> to vector<24x128xf32>
      %42 = arith.addf %38, %41 : vector<24x128xf32>
      %43 = vector.extract_strided_slice %42 {offsets = [0, 0], sizes = [24, 1], strides = [1, 1]} : vector<24x128xf32> to vector<24x1xf32>
      %c0_33 = arith.constant 0 : index
      %c0_34 = arith.constant 0 : index
      %c0_35 = arith.constant 0 : index
      %44 = vector.load %arg7[%c0_33, %c0_34, %c0_35] : memref<1x1x128xf32, #tpu.memory_space<vmem>>, vector<1x1x128xf32>
      %45 = vector.shape_cast %44 : vector<1x1x128xf32> to vector<1x128xf32>
      %cst_36 = arith.constant 0.000000e+00 : f32
      %46 = vector.shape_cast %43 : vector<24x1xf32> to vector<24x1xf32>
      %47 = vector.broadcast %46 : vector<24x1xf32> to vector<24x128xf32>
      %48 = vector.broadcast %cst_36 : f32 to vector<24x128xf32>
      %49 = arith.select %7, %47, %48 : vector<24x128xi1>, vector<24x128xf32>
      %cst_37 = arith.constant dense<0.000000e+00> : vector<128xf32>
      %50 = vector.multi_reduction <add>, %49, %cst_37 [0] : vector<24x128xf32> to vector<128xf32>
      %51 = vector.shape_cast %50 : vector<128xf32> to vector<1x128xf32>
      %52 = arith.addf %45, %51 : vector<1x128xf32>
      %c0_38 = arith.constant 0 : index
      %c0_39 = arith.constant 0 : index
      %c0_40 = arith.constant 0 : index
      %53 = vector.load %arg7[%c0_38, %c0_39, %c0_40] : memref<1x1x128xf32, #tpu.memory_space<vmem>>, vector<1x1x128xf32>
      %54 = vector.shape_cast %53 : vector<1x1x128xf32> to vector<1x128xf32>
      %55 = vector.shape_cast %52 : vector<1x128xf32> to vector<1x1x128xf32>
      tpu.vector_store %arg7[%c0_38, %c0_39, %c0_40], %55 {strides = array<i32>} : memref<1x1x128xf32, #tpu.memory_space<vmem>>, vector<1x1x128xf32>,
    } else {
    }
    return
  }
  func.func @transform_0(%arg0: i32, %arg1: i32) -> (i32, i32, i32) {
    %c0_i32 = arith.constant 0 : i32
    %c0_i32_0 = arith.constant 0 : i32
    return %arg0, %arg1, %c0_i32 : i32, i32, i32
  }
  func.func @transform_1(%arg0: i32, %arg1: i32) -> (i32, i32, i32) {
    %c0_i32 = arith.constant 0 : i32
    %c0_i32_0 = arith.constant 0 : i32
    return %arg0, %arg1, %c0_i32 : i32, i32, i32
  }
  func.func @transform_2(%arg0: i32, %arg1: i32) -> (i32, i32, i32) {
    %c0_i32 = arith.constant 0 : i32
    %c0_i32_0 = arith.constant 0 : i32
    %c0_i32_1 = arith.constant 0 : i32
    return %arg0, %c0_i32, %c0_i32_0 : i32, i32, i32
  }
  func.func @transform_3(%arg0: i32, %arg1: i32) -> (i32, i32, i32, i32) {
    %c0_i32 = arith.constant 0 : i32
    %c0_i32_0 = arith.constant 0 : i32
    %c0_i32_1 = arith.constant 0 : i32
    %c0_i32_2 = arith.constant 0 : i32
    return %arg0, %c0_i32, %c0_i32_0, %c0_i32_1 : i32, i32, i32, i32
  }
  func.func @transform_4(%arg0: i32, %arg1: i32) -> (i32, i32, i32, i32) {
    %c0_i32 = arith.constant 0 : i32
    %c0_i32_0 = arith.constant 0 : i32
    %c0_i32_1 = arith.constant 0 : i32
    %c0_i32_2 = arith.constant 0 : i32
    return %arg0, %c0_i32, %c0_i32_0, %c0_i32_1 : i32, i32, i32, i32
  }
  func.func @transform_5(%arg0: i32, %arg1: i32) -> (i32, i32, i32) {
    %c0_i32 = arith.constant 0 : i32
    %c0_i32_0 = arith.constant 0 : i32
    %c0_i32_1 = arith.constant 0 : i32
    return %arg0, %c0_i32, %c0_i32_0 : i32, i32, i32
  }
}

</mosaic_0001>

<llo_original>
// kernel: tpu_custom_call.1
$region0: #{tpu_custom_call.1}
  #allocation0 [shape = 'u32[]', space=smem, size = 0x4, offset = 0x4, fixed_abs, tag = 'smem constant byte address 0x4 - core index']
  #allocation1 [shape = 'u32[144,128]{1,0:T(1,128)}', space=vmem, size = 0x12000, scoped, tag = 'internal scratch']
  %s0 = inlined_call_operand.vmem [shape: f32[2,24,16], index: 0, kind: input, shape index: {}]
  %s1 = inlined_call_operand.vmem [shape: s32[2,24,1], index: 1, kind: input, shape index: {}]
  %s2 = inlined_call_operand.vmem [shape: f32[2,16,128], index: 2, kind: input, shape index: {}]
  %s3 = inlined_call_operand.hbm [shape: f32[2,2,128,128], index: 3, kind: input, shape index: {}]
  %s4 = inlined_call_operand.vmem [shape: f32[2,3,1,128], index: 4, kind: input, shape index: {}]
  %s5 = inlined_call_operand.hbm [shape: f32[2,1,128], index: 5, kind: output, shape index: {}]
  %s6 = sld [smem:[#allocation0]]
  $region69: #{tpu_custom_call.1} parent=0
    _
  %s8 = ssub.s32 1, %s6
  %s9 = scalar_select 0, %s8, %s6
  $region1: #{tpu_custom_call.1} parent=0
    #allocation2 [shape = 'u8[262144]{0}', space=vmem, size = 0x40000, scoped, tag = 'input window, operand 3']
    #allocation3 [shape = 's32[2]{0}', space=sflag, size = 0x8, scoped, tag = 'scoped memory for tpu_custom_call.1']
    #allocation4 [shape = 's32[2]{0}', space=sflag, size = 0x8, scoped, tag = 'scoped memory for tpu_custom_call.1']
    #allocation5 [shape = 'u8[1024]{0}', space=vmem, size = 0x400, scoped, tag = 'output window, operand 0']
    %10 = vsyncpa [#allocation3], 0
    %s11 = scalar_lea.sflag [#allocation3], 1
    %12 = vsyncpa %s11, 0
    %13 = vsyncpa [#allocation4], 0
    %s14 = scalar_lea.sflag [#allocation4], 1
    %15 = vsyncpa %s14, 0
    loop: start=0, step=1, limit=4
    $region2: #{tpu_custom_call.1} parent=1 // loop_pre_header
      _
    $region3: #{tpu_custom_call.1} parent=1 // loop_header
      %s17 = sphi 0, %s21
      %p18 = scmp.ge.s32.totalorder %s17, 4
      %s24 = sphi 0, %s36
      %s25 = sphi 0, %s32
      %s26 = sphi 0, %s24
      %s27 = sphi 0, %s25
      %s28 = sphi 0, %s26
      %s29 = sphi 0, %s27
      %s41 = sphi 0, %s43
      %s44 = sphi 0, %s41
      %s45 = sphi 0, %s44
      %s61 = sphi 0, %s45
      %s69 = sphi 0, %s71
      %s72 = sphi 0, %s69
      %s73 = sphi 0, %s72
      %s89 = sphi 0, %s73
      %s95 = sphi 0, %s97
      %s98 = sphi 0, %s95
      %s99 = sphi 0, %s98
      %s115 = sphi 0, %s99
      %s121 = sphi 0, %s123
      %s124 = sphi 0, %s121
      %s125 = sphi 0, %s124
      %s141 = sphi 0, %s125
      %s147 = sphi 0, %s149
      %s150 = sphi 0, %s147
      %s151 = sphi 0, %s150
      %s167 = sphi 0, %s151
      %s173 = sphi 0, %s175
      %s176 = sphi 0, %s173
      %s177 = sphi 0, %s176
      %s193 = sphi 0, %s177
    $region4: #{tpu_custom_call.1} parent=1 // loop_header_branch
      %20 = sbr.rel (%p18) target = $region8
    $region5: #{tpu_custom_call.1} parent=1 // loop_body
      %s22 = ssub.s32 %s17, 1
      %s23 = ssub.s32 %s17, 2
      %s30 = sadd.s32 1, %s25
      %p31 = scmp.ge.s32.totalorder %s30, 1
      %s32 = scalar_select %p31, 0, %s30
      %s33 = sadd.s32 1, %s24
      %s34 = scalar_select %p31, %s33, %s24
      %p35 = scmp.ge.s32.totalorder %s34, 2
      %s36 = scalar_select %p35, 0, %s34
      %s37 = ssub.s32 %s24, %s36
      %s38 = ssub.s32 %s25, %s32
      %s39 = sor.u32 %s37, %s38
      %p40 = scmp.eq.s32.totalorder %s39, 0
      %s42 = sadd.s32 %s41, 1
      %s43 = scalar_select %p40, %s41, %s42
      %p46 = pneg %p40
      %p47 = scmp.eq.s32.totalorder %s17, 1
      %p48 = por %p46, %p47
      %p49 = scmp.ne.s32.totalorder %s41, %s44
      %p50 = scmp.eq.s32.totalorder %s17, 0
      %p51 = por %p49, %p50
      %p52 = scmp.ne.s32.totalorder %s41, %s44
      %p53 = scmp.eq.s32.totalorder %s22, 1
      %p54 = por %p52, %p53
      %p55 = scmp.ne.s32.totalorder %s44, %s45
      %p56 = scmp.eq.s32.totalorder %s22, 0
      %p57 = por %p55, %p56
      %p58 = scmp.ne.s32.totalorder %s44, %s45
      %p59 = scmp.eq.s32.totalorder %s23, 1
      %p60 = por %p58, %p59
      %p62 = scmp.ne.s32.totalorder %s45, %s61
      %p63 = scmp.eq.s32.totalorder %s23, 0
      %p64 = por %p62, %p63
      %s65 = ssub.s32 %s24, %s36
      %s66 = ssub.s32 %s25, %s32
      %s67 = sor.u32 %s65, %s66
      %p68 = scmp.eq.s32.totalorder %s67, 0
      %s70 = sadd.s32 %s69, 1
      %s71 = scalar_select %p68, %s69, %s70
      %p74 = pneg %p68
      %p75 = scmp.eq.s32.totalorder %s17, 1
      %p76 = por %p74, %p75
      %p77 = scmp.ne.s32.totalorder %s69, %s72
      %p78 = scmp.eq.s32.totalorder %s17, 0
      %p79 = por %p77, %p78
      %p80 = scmp.ne.s32.totalorder %s69, %s72
      %p81 = scmp.eq.s32.totalorder %s22, 1
      %p82 = por %p80, %p81
      %p83 = scmp.ne.s32.totalorder %s72, %s73
      %p84 = scmp.eq.s32.totalorder %s22, 0
      %p85 = por %p83, %p84
      %p86 = scmp.ne.s32.totalorder %s72, %s73
      %p87 = scmp.eq.s32.totalorder %s23, 1
      %p88 = por %p86, %p87
      %p90 = scmp.ne.s32.totalorder %s73, %s89
      %p91 = scmp.eq.s32.totalorder %s23, 0
      %p92 = por %p90, %p91
      %s93 = ssub.s32 %s24, %s36
      %p94 = scmp.eq.s32.totalorder %s93, 0
      %s96 = sadd.s32 %s95, 1
      %s97 = scalar_select %p94, %s95, %s96
      %p100 = pneg %p94
      %p101 = scmp.eq.s32.totalorder %s17, 1
      %p102 = por %p100, %p101
      %p103 = scmp.ne.s32.totalorder %s95, %s98
      %p104 = scmp.eq.s32.totalorder %s17, 0
      %p105 = por %p103, %p104
      %p106 = scmp.ne.s32.totalorder %s95, %s98
      %p107 = scmp.eq.s32.totalorder %s22, 1
      %p108 = por %p106, %p107
      %p109 = scmp.ne.s32.totalorder %s98, %s99
      %p110 = scmp.eq.s32.totalorder %s22, 0
      %p111 = por %p109, %p110
      %p112 = scmp.ne.s32.totalorder %s98, %s99
      %p113 = scmp.eq.s32.totalorder %s23, 1
      %p114 = por %p112, %p113
      %p116 = scmp.ne.s32.totalorder %s99, %s115
      %p117 = scmp.eq.s32.totalorder %s23, 0
      %p118 = por %p116, %p117
      %s119 = ssub.s32 %s24, %s36
      %p120 = scmp.eq.s32.totalorder %s119, 0
      %s122 = sadd.s32 %s121, 1
      %s123 = scalar_select %p120, %s121, %s122
      %p126 = pneg %p120
      %p127 = scmp.eq.s32.totalorder %s17, 1
      %p128 = por %p126, %p127
      %p129 = scmp.ne.s32.totalorder %s121, %s124
      %p130 = scmp.eq.s32.totalorder %s17, 0
      %p131 = por %p129, %p130
      %p132 = scmp.ne.s32.totalorder %s121, %s124
      %p133 = scmp.eq.s32.totalorder %s22, 1
      %p134 = por %p132, %p133
      %p135 = scmp.ne.s32.totalorder %s124, %s125
      %p136 = scmp.eq.s32.totalorder %s22, 0
      %p137 = por %p135, %p136
      %p138 = scmp.ne.s32.totalorder %s124, %s125
      %p139 = scmp.eq.s32.totalorder %s23, 1
      %p140 = por %p138, %p139
      %p142 = scmp.ne.s32.totalorder %s125, %s141
      %p143 = scmp.eq.s32.totalorder %s23, 0
      %p144 = por %p142, %p143
      %s145 = ssub.s32 %s24, %s36
      %p146 = scmp.eq.s32.totalorder %s145, 0
      %s148 = sadd.s32 %s147, 1
      %s149 = scalar_select %p146, %s147, %s148
      %p152 = pneg %p146
      %p153 = scmp.eq.s32.totalorder %s17, 1
      %p154 = por %p152, %p153
      %p155 = scmp.ne.s32.totalorder %s147, %s150
      %p156 = scmp.eq.s32.totalorder %s17, 0
      %p157 = por %p155, %p156
      %p158 = scmp.ne.s32.totalorder %s147, %s150
      %p159 = scmp.eq.s32.totalorder %s22, 1
      %p160 = por %p158, %p159
      %p161 = scmp.ne.s32.totalorder %s150, %s151
      %p162 = scmp.eq.s32.totalorder %s22, 0
      %p163 = por %p161, %p162
      %p164 = scmp.ne.s32.totalorder %s150, %s151
      %p165 = scmp.eq.s32.totalorder %s23, 1
      %p166 = por %p164, %p165
      %p168 = scmp.ne.s32.totalorder %s151, %s167
      %p169 = scmp.eq.s32.totalorder %s23, 0
      %p170 = por %p168, %p169
      %s171 = ssub.s32 %s24, %s36
      %p172 = scmp.eq.s32.totalorder %s171, 0
      %s174 = sadd.s32 %s173, 1
      %s175 = scalar_select %p172, %s173, %s174
      %p178 = pneg %p172
      %p179 = scmp.eq.s32.totalorder %s17, 1
      %p180 = por %p178, %p179
      %p181 = scmp.ne.s32.totalorder %s173, %s176
      %p182 = scmp.eq.s32.totalorder %s17, 0
      %p183 = por %p181, %p182
      %p184 = scmp.ne.s32.totalorder %s173, %s176
      %p185 = scmp.eq.s32.totalorder %s22, 1
      %p186 = por %p184, %p185
      %p187 = scmp.ne.s32.totalorder %s176, %s177
      %p188 = scmp.eq.s32.totalorder %s22, 0
      %p189 = por %p187, %p188
      %p190 = scmp.ne.s32.totalorder %s176, %s177
      %p191 = scmp.eq.s32.totalorder %s23, 1
      %p192 = por %p190, %p191
      %p194 = scmp.ne.s32.totalorder %s177, %s193
      %p195 = scmp.eq.s32.totalorder %s23, 0
      %p196 = por %p194, %p195
      %p197 = scmp.le.s32.totalorder 1, %s17
      %p198 = scmp.lt.s32.totalorder %s17, 3
      %p199 = pnand %p197, %p198
      %p200 = pneg %p199
      // Predicated region
      $region9: #{tpu_custom_call.1} parent=5 // pred_check
        _
      $region10: #{tpu_custom_call.1} parent=5 // pred_check_branch
        %202 = sbr.rel (%p199) target = $region12
      $region11: #{tpu_custom_call.1} parent=5 // pred_region
        %s203 = ssub.s32 %s17, 1
      $region12: #{tpu_custom_call.1} parent=5 // pred_fallthru
        _
      %p204 = scmp.lt.s32.totalorder %s17, 2
      // Predicated region
      $region13: #{tpu_custom_call.1} parent=5 // pred_check
        %p205 = pneg %p204
      $region14: #{tpu_custom_call.1} parent=5 // pred_check_branch
        %207 = sbr.rel (%p205) target = $region16
      $region15: #{tpu_custom_call.1} parent=5 // pred_region
        // Predicated region
        $region17: #{tpu_custom_call.1} parent=15 // pred_check
          %p208 = pneg %p51
        $region18: #{tpu_custom_call.1} parent=15 // pred_check_branch
          %210 = sbr.rel (%p208) target = $region20
        $region19: #{tpu_custom_call.1} parent=15 // pred_region
          %s211 = smul.u32 3, %s25
          %p212 = scmp.lt.s32.totalorder %s24, 1
          %s213 = scalar_select %p212, %s24, 1
          %p214 = scmp.lt.s32.totalorder %s211, 2
          %s215 = scalar_select %p214, %s211, 2
          %s216 = smul.addr %s213, 3
          %s217 = sadd.s32 %s215, %s216
          %s218 = smul.addr %s217, 8
          %s219 = scalar_lea.vmem %s0, %s218
          %s220 = smul.u32 3, %s25
        $region20: #{tpu_custom_call.1} parent=15 // pred_fallthru
          _
        // Predicated region
        $region21: #{tpu_custom_call.1} parent=15 // pred_check
          %p221 = pneg %p79
        $region22: #{tpu_custom_call.1} parent=15 // pred_check_branch
          %223 = sbr.rel (%p221) target = $region24
        $region23: #{tpu_custom_call.1} parent=15 // pred_region
          %s224 = smul.u32 3, %s25
          %p225 = scmp.lt.s32.totalorder %s24, 1
          %s226 = scalar_select %p225, %s24, 1
          %p227 = scmp.lt.s32.totalorder %s224, 2
          %s228 = scalar_select %p227, %s224, 2
          %s229 = smul.addr %s226, 3
          %s230 = sadd.s32 %s228, %s229
          %s231 = smul.addr %s230, 8
          %s232 = scalar_lea.vmem %s1, %s231
          %s233 = smul.u32 3, %s25
        $region24: #{tpu_custom_call.1} parent=15 // pred_fallthru
          _
        // Predicated region
        $region25: #{tpu_custom_call.1} parent=15 // pred_check
          %p234 = pneg %p105
        $region26: #{tpu_custom_call.1} parent=15 // pred_check_branch
          %236 = sbr.rel (%p234) target = $region28
        $region27: #{tpu_custom_call.1} parent=15 // pred_region
          %p237 = scmp.lt.s32.totalorder %s24, 1
          %s238 = scalar_select %p237, %s24, 1
          %s239 = smul.addr %s238, 2
          %s240 = smul.addr %s239, 8
          %s241 = scalar_lea.vmem %s2, %s240
        $region28: #{tpu_custom_call.1} parent=15 // pred_fallthru
          _
        // Predicated region
        $region29: #{tpu_custom_call.1} parent=15 // pred_check
          %p242 = pneg %p131
        $region30: #{tpu_custom_call.1} parent=15 // pred_check_branch
          %244 = sbr.rel (%p242) target = $region32
        $region31: #{tpu_custom_call.1} parent=15 // pred_region
          %s245 = sand.u32 %s121, 1
          %s246 = scalar_lea.sflag [#allocation3], %s245
          %s247 = sand.u32 %s121, 1
          %s248 = smul.addr %s247, 256
          %s249 = scalar_lea.vmem [#allocation2], %s248
          %s251 = ssub.s32 4096, 4096
          %252 = vsyncadd %s246, %s251
          %s253 = smul.addr %s24, 32
          %s254 = smul.addr %s253, 128
          %s255 = scalar_lea.hbm %s3, %s254
          %s256 = sshll.u32 %s249, 4
          %s257 = int_to_ptr.vmem [resolvable:$true] %s256
          %262 = dma.hbm_to_vmem [thread:$0]  %s255, 4096, %s257, %s246, 128, 128, 8
        $region32: #{tpu_custom_call.1} parent=15 // pred_fallthru
          _
        // Predicated region
        $region33: #{tpu_custom_call.1} parent=15 // pred_check
          %p263 = pneg %p157
        $region34: #{tpu_custom_call.1} parent=15 // pred_check_branch
          %265 = sbr.rel (%p263) target = $region36
        $region35: #{tpu_custom_call.1} parent=15 // pred_region
          %p266 = scmp.lt.s32.totalorder %s24, 1
          %s267 = scalar_select %p266, %s24, 1
          %s268 = smul.addr %s267, 3
          %s269 = scalar_lea.vmem %s4, %s268
        $region36: #{tpu_custom_call.1} parent=15 // pred_fallthru
          _
      $region16: #{tpu_custom_call.1} parent=5 // pred_fallthru
        _
      %p270 = scmp.le.s32.totalorder 1, %s17
      %p271 = scmp.lt.s32.totalorder %s17, 3
      %p272 = pnand %p270, %p271
      %p273 = pneg %p272
      // Predicated region
      $region37: #{tpu_custom_call.1} parent=5 // pred_check
        _
      $region38: #{tpu_custom_call.1} parent=5 // pred_check_branch
        %275 = sbr.rel (%p272) target = $region40
      $region39: #{tpu_custom_call.1} parent=5 // pred_region
        %s276 = ssub.s32 %s17, 1
        %s277 = sand.u32 %s124, 1
        %s278 = scalar_lea.sflag [#allocation3], %s277
        %s279 = sand.u32 %s124, 1
        %s280 = smul.addr %s279, 256
        %s281 = scalar_lea.vmem [#allocation2], %s280
        // Predicated region
        $region41: #{tpu_custom_call.1} parent=39 // pred_check
          %p282 = pneg %p137
        $region42: #{tpu_custom_call.1} parent=39 // pred_check_branch
          %284 = sbr.rel (%p282) target = $region44
        $region43: #{tpu_custom_call.1} parent=39 // pred_region
          %285 = dma.done %s278, 4096
        $region44: #{tpu_custom_call.1} parent=39 // pred_fallthru
          _
        %s286 = smul.u32 3, %s27
        %p287 = scmp.lt.s32.totalorder %s26, 1
        %s288 = scalar_select %p287, %s26, 1
        %p289 = scmp.lt.s32.totalorder %s286, 2
        %s290 = scalar_select %p289, %s286, 2
        %s291 = smul.addr %s288, 3
        %s292 = sadd.s32 %s290, %s291
        %s293 = smul.addr %s292, 8
        %s294 = scalar_lea.vmem %s0, %s293
        %p295 = pneg %p57
        %p296 = pneg %p54
        %s297 = smul.u32 3, %s27
        %p298 = scmp.lt.s32.totalorder %s26, 1
        %s299 = scalar_select %p298, %s26, 1
        %p300 = scmp.lt.s32.totalorder %s297, 2
        %s301 = scalar_select %p300, %s297, 2
        %s302 = smul.addr %s299, 3
        %s303 = sadd.s32 %s301, %s302
        %s304 = smul.addr %s303, 8
        %s305 = scalar_lea.vmem %s1, %s304
        %p306 = pneg %p85
        %p307 = pneg %p82
        %p308 = scmp.lt.s32.totalorder %s26, 1
        %s309 = scalar_select %p308, %s26, 1
        %s310 = smul.addr %s309, 2
        %s311 = smul.addr %s310, 8
        %s312 = scalar_lea.vmem %s2, %s311
        %p313 = pneg %p111
        %p314 = pneg %p108
        %s315 = sand.u32 %s124, 1
        %s316 = scalar_lea.sflag [#allocation3], %s315
        %s317 = sand.u32 %s124, 1
        %s318 = smul.addr %s317, 256
        %s319 = scalar_lea.vmem [#allocation2], %s318
        %p320 = pneg %p137
        %p321 = pneg %p134
        %p322 = scmp.lt.s32.totalorder %s26, 1
        %s323 = scalar_select %p322, %s26, 1
        %s324 = smul.addr %s323, 3
        %s325 = scalar_lea.vmem %s4, %s324
        %p326 = pneg %p163
        %p327 = pneg %p160
        %p328 = pneg %p189
        %p329 = pneg %p186
        %s330 = sand.u32 %s176, 1
        %s331 = scalar_lea.sflag [#allocation4], %s330
        %s332 = sand.u32 %s176, 1
        %s333 = scalar_lea.vmem [#allocation5], %s332
        %s334 = smul.u32 3, %s27
        %p335 = scmp.lt.s32.totalorder %s26, 1
        %s336 = scalar_select %p335, %s26, 1
        %p337 = scmp.lt.s32.totalorder %s334, 2
        %s338 = scalar_select %p337, %s334, 2
        %s339 = smul.addr %s336, 3
        %s340 = sadd.s32 %s338, %s339
        %s341 = smul.addr %s340, 8
        %s342 = scalar_lea.vmem %s0, %s341
        %s343 = smul.u32 3, %s27
        %s344 = smul.u32 3, %s27
        %p345 = scmp.lt.s32.totalorder %s26, 1
        %s346 = scalar_select %p345, %s26, 1
        %p347 = scmp.lt.s32.totalorder %s344, 2
        %s348 = scalar_select %p347, %s344, 2
        %s349 = smul.addr %s346, 3
        %s350 = sadd.s32 %s348, %s349
        %s351 = smul.addr %s350, 8
        %s352 = scalar_lea.vmem %s1, %s351
        %s353 = smul.u32 3, %s27
        %p354 = scmp.lt.s32.totalorder %s26, 1
        %s355 = scalar_select %p354, %s26, 1
        %s356 = smul.addr %s355, 2
        %s357 = smul.addr %s356, 8
        %s358 = scalar_lea.vmem %s2, %s357
        %p359 = scmp.lt.s32.totalorder %s26, 1
        %s360 = scalar_select %p359, %s26, 1
        %s361 = smul.addr %s360, 3
        %s362 = scalar_lea.vmem %s4, %s361
        %p363 = scmp.eq.s32.totalorder %s27, 0
        // Predicated region
        $region45: #{tpu_custom_call.1} parent=39 // pred_check
          %p364 = pneg %p363
        $region46: #{tpu_custom_call.1} parent=39 // pred_check_branch
          %366 = sbr.rel (%p364) target = $region48
        $region47: #{tpu_custom_call.1} parent=39 // pred_region
          %367 = vst [vmem:[%s333] sm:$0x1] 0.0
        $region48: #{tpu_custom_call.1} parent=39 // pred_fallthru
          _
        %v368 = vld [vmem:[%s352] sm:$0xff]
        %v369 = vld [vmem:[%s352 + $0x8] sm:$0xff]
        %v370 = vld [vmem:[%s352 + $0x10] sm:$0xff]
        %v371 = vlaneseq
        %v372 = vand.u32 %v371, 127
        %373 = vset.pattern.permute.xlu0 0
        %374 = vperm.xlu0 %373, %v368
        %v375 = vpop.permute.xlu0 %374
        %376 = vset.pattern.permute.xlu0 0
        %377 = vperm.xlu0 %376, %v369
        %v378 = vpop.permute.xlu0 %377
        %379 = vset.pattern.permute.xlu0 0
        %380 = vperm.xlu0 %379, %v370
        %v381 = vpop.permute.xlu0 %380
        %vm382 = vcmp.eq.s32.totalorder %v375, %v372
        %vm383 = vcmp.eq.s32.totalorder %v378, %v372
        %vm384 = vcmp.eq.s32.totalorder %v381, %v372
        %p385 = scmp.eq.s32.totalorder %s26, 0
        // Predicated region
        $region49: #{tpu_custom_call.1} parent=39 // pred_check
          %p386 = pneg %p385
        $region50: #{tpu_custom_call.1} parent=39 // pred_check_branch
          %388 = sbr.rel (%p386) target = $region52
        $region51: #{tpu_custom_call.1} parent=39 // pred_region
          %v389 = vld [vmem:[%s342] sm:$0xff]
          %v390 = vld [vmem:[%s342 + $0x8] sm:$0xff]
          %v391 = vld [vmem:[%s342 + $0x10] sm:$0xff]
          %v392 = vld [vmem:[%s358] sm:$0xff]
          %v393 = vld [vmem:[%s358 + $0x8] sm:$0xff]
          %v394 = vld [vmem:[%s362] sm:$0x1]
          %v396 = vlaneseq
          %v397 = vshrl.u32 %v396, 7
          %v398 = vsub.s32 0, %v397
          %v399 = vrot.slane %v394, %v398
          %vm401 = vcmask 130048
          %v403 = vsel %vm401, %v389, 0
          %v406 = vsel %vm401, %v390, 0
          %v409 = vsel %vm401, %v391, 0
          %411 = vmatprep.subr.mxu0 0.0
          %412 = vmatpush1.msra.mxu0 %v392
          %413 = vmatprep.subr.mxu0 0.0
          %414 = vmatpush1.msra.mxu0 %v393
          %415 = vmatprep.subr.mxu0 0.0
          %416 = vmatpush1.msra.mxu0 0.0
          %417 = vmatprep.subr.mxu0 0.0
          %418 = vmatpush1.msra.mxu0 0.0
          %419 = vmatprep.subr.mxu0 0.0
          %420 = vmatpush1.msra.mxu0 0.0
          %421 = vmatprep.subr.mxu0 0.0
          %422 = vmatpush1.msra.mxu0 0.0
          %423 = vmatprep.subr.mxu0 0.0
          %424 = vmatpush1.msra.mxu0 0.0
          %425 = vmatprep.subr.mxu0 0.0
          %426 = vmatpush1.msra.mxu0 0.0
          %427 = vmatprep.subr.mxu0 0.0
          %428 = vmatpush1.msra.mxu0 0.0
          %429 = vmatprep.subr.mxu0 0.0
          %430 = vmatpush1.msra.mxu0 0.0
          %431 = vmatprep.subr.mxu0 0.0
          %432 = vmatpush1.msra.mxu0 0.0
          %433 = vmatprep.subr.mxu0 0.0
          %434 = vmatpush1.msra.mxu0 0.0
          %435 = vmatprep.subr.mxu0 0.0
          %436 = vmatpush1.msra.mxu0 0.0
          %437 = vmatprep.subr.mxu0 0.0
          %438 = vmatpush1.msra.mxu0 0.0
          %439 = vmatprep.subr.mxu0 0.0
          %440 = vmatpush1.msra.mxu0 0.0
          %441 = vmatprep.subr.mxu0 0.0
          %442 = vmatpush1.msra.mxu0 0.0
          %443 = vmatprep.subr.mxu0 0.0
          %444 = vmatpush1.msra.mxu0 0.0
          %445 = vmatprep.subr.mxu0 0.0
          %446 = vmatpush1.msra.mxu0 0.0
          %447 = vmatprep.subr.mxu0 0.0
          %448 = vmatpush1.msra.mxu0 0.0
          %449 = vmatprep.subr.mxu0 0.0
          %450 = vmatpush1.msra.mxu0 0.0
          %451 = vmatprep.subr.mxu0 0.0
          %452 = vmatpush1.msra.mxu0 0.0
          %453 = vmatprep.subr.mxu0 0.0
          %454 = vmatpush1.msra.mxu0 0.0
          %455 = vmatprep.subr.mxu0 0.0
          %456 = vmatpush1.msra.mxu0 0.0
          %457 = vmatprep.subr.mxu0 0.0
          %458 = vmatpush1.msra.mxu0 0.0
          %459 = vmatprep.subr.mxu0 0.0
          %460 = vmatpush1.msra.mxu0 0.0
          %461 = vmatprep.subr.mxu0 0.0
          %462 = vmatpush1.msra.mxu0 0.0
          %463 = vmatprep.subr.mxu0 0.0
          %464 = vmatpush1.msra.mxu0 0.0
          %465 = vmatprep.subr.mxu0 0.0
          %466 = vmatpush1.msra.mxu0 0.0
          %467 = vmatprep.subr.mxu0 0.0
          %468 = vmatpush1.msra.mxu0 0.0
          %469 = vmatprep.subr.mxu0 0.0
          %470 = vmatpush1.msra.mxu0 0.0
          %471 = vmatprep.subr.mxu0 0.0
          %472 = vmatpush1.msra.mxu0 0.0
          %473 = vmatprep.subr.mxu0 0.0
          %474 = vmatpush1.msra.mxu0 0.0
          %475 = vmatprep.mubr.f32.mxu0 0.0
          %476 = vmatmul.mubr.f32.gmra.mrb[0].mxu0 %v403
          %v477 = vpop.f32.mrb[0].mxu0
          %v478 = vadd.f32 %v399, %v477
          %v479 = vpop.f32.mrb[0].mxu0
          %480 = vmatprep.mubr.f32.mxu0 0.0
          %481 = vmatmul.mubr.f32.gmra.mrb[0].mxu0 %v406
          %v482 = vpop.f32.mrb[0].mxu0
          %v483 = vadd.f32 %v399, %v482
          %v484 = vpop.f32.mrb[0].mxu0
          %485 = vmatprep.mubr.f32.mxu0 0.0
          %486 = vmatmul.mubr.f32.gmra.mrb[0].mxu0 %v409
          %v487 = vpop.f32.mrb[0].mxu0
          %v488 = vadd.f32 %v399, %v487
          %v489 = vpop.f32.mrb[0].mxu0
          %490 = vdwg.mxu0
          %v491 = vtanh.pop %v478
          %v492 = vtanh.pop %v483
          %v493 = vtanh.pop %v488
          %v494 = vld [vmem:[%s281] sm:$0xff]
          %v495 = vld [vmem:[%s281 + $0x8] sm:$0xff]
          %v496 = vld [vmem:[%s281 + $0x10] sm:$0xff]
          %v497 = vld [vmem:[%s281 + $0x18] sm:$0xff]
          %v498 = vld [vmem:[%s281 + $0x20] sm:$0xff]
          %v499 = vld [vmem:[%s281 + $0x28] sm:$0xff]
          %v500 = vld [vmem:[%s281 + $0x30] sm:$0xff]
          %v501 = vld [vmem:[%s281 + $0x38] sm:$0xff]
          %v502 = vld [vmem:[%s281 + $0x40] sm:$0xff]
          %v503 = vld [vmem:[%s281 + $0x48] sm:$0xff]
          %v504 = vld [vmem:[%s281 + $0x50] sm:$0xff]
          %v505 = vld [vmem:[%s281 + $0x58] sm:$0xff]
          %v506 = vld [vmem:[%s281 + $0x60] sm:$0xff]
          %v507 = vld [vmem:[%s281 + $0x68] sm:$0xff]
          %v508 = vld [vmem:[%s281 + $0x70] sm:$0xff]
          %v509 = vld [vmem:[%s281 + $0x78] sm:$0xff]
          %s510 = scalar_lea.vmem %s362, 1
          %v511 = vld [vmem:[%s510] sm:$0x1]
          %v513 = vlaneseq
          %v514 = vshrl.u32 %v513, 7
          %v515 = vsub.s32 0, %v514
          %v516 = vrot.slane %v511, %v515
          %518 = vmatprep.subr.mxu0 0.0
          %519 = vmatpush1.msra.mxu0 %v494
          %520 = vmatprep.subr.mxu0 0.0
          %521 = vmatpush1.msra.mxu0 %v495
          %522 = vmatprep.subr.mxu0 0.0
          %523 = vmatpush1.msra.mxu0 %v496
          %524 = vmatprep.subr.mxu0 0.0
          %525 = vmatpush1.msra.mxu0 %v497
          %526 = vmatprep.subr.mxu0 0.0
          %527 = vmatpush1.msra.mxu0 %v498
          %528 = vmatprep.subr.mxu0 0.0
          %529 = vmatpush1.msra.mxu0 %v499
          %530 = vmatprep.subr.mxu0 0.0
          %531 = vmatpush1.msra.mxu0 %v500
          %532 = vmatprep.subr.mxu0 0.0
          %533 = vmatpush1.msra.mxu0 %v501
          %534 = vmatprep.subr.mxu0 0.0
          %535 = vmatpush1.msra.mxu0 %v502
          %536 = vmatprep.subr.mxu0 0.0
          %537 = vmatpush1.msra.mxu0 %v503
          %538 = vmatprep.subr.mxu0 0.0
          %539 = vmatpush1.msra.mxu0 %v504
          %540 = vmatprep.subr.mxu0 0.0
          %541 = vmatpush1.msra.mxu0 %v505
          %542 = vmatprep.subr.mxu0 0.0
          %543 = vmatpush1.msra.mxu0 %v506
          %544 = vmatprep.subr.mxu0 0.0
          %545 = vmatpush1.msra.mxu0 %v507
          %546 = vmatprep.subr.mxu0 0.0
          %547 = vmatpush1.msra.mxu0 %v508
          %548 = vmatprep.subr.mxu0 0.0
          %549 = vmatpush1.msra.mxu0 %v509
          %550 = vmatprep.subr.mxu0 0.0
          %551 = vmatpush1.msra.mxu0 0.0
          %552 = vmatprep.subr.mxu0 0.0
          %553 = vmatpush1.msra.mxu0 0.0
          %554 = vmatprep.subr.mxu0 0.0
          %555 = vmatpush1.msra.mxu0 0.0
          %556 = vmatprep.subr.mxu0 0.0
          %557 = vmatpush1.msra.mxu0 0.0
          %558 = vmatprep.subr.mxu0 0.0
          %559 = vmatpush1.msra.mxu0 0.0
          %560 = vmatprep.subr.mxu0 0.0
          %561 = vmatpush1.msra.mxu0 0.0
          %562 = vmatprep.subr.mxu0 0.0
          %563 = vmatpush1.msra.mxu0 0.0
          %564 = vmatprep.subr.mxu0 0.0
          %565 = vmatpush1.msra.mxu0 0.0
          %566 = vmatprep.subr.mxu0 0.0
          %567 = vmatpush1.msra.mxu0 0.0
          %568 = vmatprep.subr.mxu0 0.0
          %569 = vmatpush1.msra.mxu0 0.0
          %570 = vmatprep.subr.mxu0 0.0
          %571 = vmatpush1.msra.mxu0 0.0
          %572 = vmatprep.subr.mxu0 0.0
          %573 = vmatpush1.msra.mxu0 0.0
          %574 = vmatprep.subr.mxu0 0.0
          %575 = vmatpush1.msra.mxu0 0.0
          %576 = vmatprep.subr.mxu0 0.0
          %577 = vmatpush1.msra.mxu0 0.0
          %578 = vmatprep.subr.mxu0 0.0
          %579 = vmatpush1.msra.mxu0 0.0
          %580 = vmatprep.subr.mxu0 0.0
          %581 = vmatpush1.msra.mxu0 0.0
          %582 = vmatprep.mubr.f32.mxu0 0.0
          %583 = vmatmul.mubr.f32.gmra.mrb[0].mxu0 %v491
          %v584 = vpop.f32.mrb[0].mxu0
          %v585 = vadd.f32 %v516, %v584
          %v586 = vpop.f32.mrb[0].mxu0
          %587 = vmatprep.mubr.f32.mxu0 0.0
          %588 = vmatmul.mubr.f32.gmra.mrb[0].mxu0 %v492
          %v589 = vpop.f32.mrb[0].mxu0
          %v590 = vadd.f32 %v516, %v589
          %v591 = vpop.f32.mrb[0].mxu0
          %592 = vmatprep.mubr.f32.mxu0 0.0
          %593 = vmatmul.mubr.f32.gmra.mrb[0].mxu0 %v493
          %v594 = vpop.f32.mrb[0].mxu0
          %v595 = vadd.f32 %v516, %v594
          %v596 = vpop.f32.mrb[0].mxu0
          %597 = vdwg.mxu0
          %v598 = vtanh.pop %v585
          %v599 = vtanh.pop %v590
          %v600 = vtanh.pop %v595
          %s601 = scalar_lea.vmem %s281, 128 [#allocation2]
          %v602 = vld [vmem:[%s601] sm:$0xff]
          %v603 = vld [vmem:[%s601 + $0x8] sm:$0xff]
          %v604 = vld [vmem:[%s601 + $0x10] sm:$0xff]
          %v605 = vld [vmem:[%s601 + $0x18] sm:$0xff]
          %v606 = vld [vmem:[%s601 + $0x20] sm:$0xff]
          %v607 = vld [vmem:[%s601 + $0x28] sm:$0xff]
          %v608 = vld [vmem:[%s601 + $0x30] sm:$0xff]
          %v609 = vld [vmem:[%s601 + $0x38] sm:$0xff]
          %v610 = vld [vmem:[%s601 + $0x40] sm:$0xff]
          %v611 = vld [vmem:[%s601 + $0x48] sm:$0xff]
          %v612 = vld [vmem:[%s601 + $0x50] sm:$0xff]
          %v613 = vld [vmem:[%s601 + $0x58] sm:$0xff]
          %v614 = vld [vmem:[%s601 + $0x60] sm:$0xff]
          %v615 = vld [vmem:[%s601 + $0x68] sm:$0xff]
          %v616 = vld [vmem:[%s601 + $0x70] sm:$0xff]
          %v617 = vld [vmem:[%s601 + $0x78] sm:$0xff]
          %s618 = scalar_lea.vmem %s362, 2
          %v619 = vld [vmem:[%s618] sm:$0x1]
          %v621 = vlaneseq
          %v622 = vshrl.u32 %v621, 7
          %v623 = vsub.s32 0, %v622
          %v624 = vrot.slane %v619, %v623
          %626 = vmatprep.subr.mxu0 0.0
          %627 = vmatpush1.msra.mxu0 %v602
          %628 = vmatprep.subr.mxu0 0.0
          %629 = vmatpush1.msra.mxu0 %v603
          %630 = vmatprep.subr.mxu0 0.0
          %631 = vmatpush1.msra.mxu0 %v604
          %632 = vmatprep.subr.mxu0 0.0
          %633 = vmatpush1.msra.mxu0 %v605
          %634 = vmatprep.subr.mxu0 0.0
          %635 = vmatpush1.msra.mxu0 %v606
          %636 = vmatprep.subr.mxu0 0.0
          %637 = vmatpush1.msra.mxu0 %v607
          %638 = vmatprep.subr.mxu0 0.0
          %639 = vmatpush1.msra.mxu0 %v608
          %640 = vmatprep.subr.mxu0 0.0
          %641 = vmatpush1.msra.mxu0 %v609
          %642 = vmatprep.subr.mxu0 0.0
          %643 = vmatpush1.msra.mxu0 %v610
          %644 = vmatprep.subr.mxu0 0.0
          %645 = vmatpush1.msra.mxu0 %v611
          %646 = vmatprep.subr.mxu0 0.0
          %647 = vmatpush1.msra.mxu0 %v612
          %648 = vmatprep.subr.mxu0 0.0
          %649 = vmatpush1.msra.mxu0 %v613
          %650 = vmatprep.subr.mxu0 0.0
          %651 = vmatpush1.msra.mxu0 %v614
          %652 = vmatprep.subr.mxu0 0.0
          %653 = vmatpush1.msra.mxu0 %v615
          %654 = vmatprep.subr.mxu0 0.0
          %655 = vmatpush1.msra.mxu0 %v616
          %656 = vmatprep.subr.mxu0 0.0
          %657 = vmatpush1.msra.mxu0 %v617
          %658 = vmatprep.subr.mxu0 0.0
          %659 = vmatpush1.msra.mxu0 0.0
          %660 = vmatprep.subr.mxu0 0.0
          %661 = vmatpush1.msra.mxu0 0.0
          %662 = vmatprep.subr.mxu0 0.0
          %663 = vmatpush1.msra.mxu0 0.0
          %664 = vmatprep.subr.mxu0 0.0
          %665 = vmatpush1.msra.mxu0 0.0
          %666 = vmatprep.subr.mxu0 0.0
          %667 = vmatpush1.msra.mxu0 0.0
          %668 = vmatprep.subr.mxu0 0.0
          %669 = vmatpush1.msra.mxu0 0.0
          %670 = vmatprep.subr.mxu0 0.0
          %671 = vmatpush1.msra.mxu0 0.0
          %672 = vmatprep.subr.mxu0 0.0
          %673 = vmatpush1.msra.mxu0 0.0
          %674 = vmatprep.subr.mxu0 0.0
          %675 = vmatpush1.msra.mxu0 0.0
          %676 = vmatprep.subr.mxu0 0.0
          %677 = vmatpush1.msra.mxu0 0.0
          %678 = vmatprep.subr.mxu0 0.0
          %679 = vmatpush1.msra.mxu0 0.0
          %680 = vmatprep.subr.mxu0 0.0
          %681 = vmatpush1.msra.mxu0 0.0
          %682 = vmatprep.subr.mxu0 0.0
          %683 = vmatpush1.msra.mxu0 0.0
          %684 = vmatprep.subr.mxu0 0.0
          %685 = vmatpush1.msra.mxu0 0.0
          %686 = vmatprep.subr.mxu0 0.0
          %687 = vmatpush1.msra.mxu0 0.0
          %688 = vmatprep.subr.mxu0 0.0
          %689 = vmatpush1.msra.mxu0 0.0
          %690 = vmatprep.mubr.f32.mxu0 0.0
          %691 = vmatmul.mubr.f32.gmra.mrb[0].mxu0 %v598
          %v692 = vpop.f32.mrb[0].mxu0
          %v693 = vadd.f32 %v624, %v692
          %v694 = vpop.f32.mrb[0].mxu0
          %695 = vmatprep.mubr.f32.mxu0 0.0
          %696 = vmatmul.mubr.f32.gmra.mrb[0].mxu0 %v599
          %v697 = vpop.f32.mrb[0].mxu0
          %v698 = vadd.f32 %v624, %v697
          %v699 = vpop.f32.mrb[0].mxu0
          %700 = vmatprep.mubr.f32.mxu0 0.0
          %701 = vmatmul.mubr.f32.gmra.mrb[0].mxu0 %v600
          %v702 = vpop.f32.mrb[0].mxu0
          %v703 = vadd.f32 %v624, %v702
          %v704 = vpop.f32.mrb[0].mxu0
          %705 = vdwg.mxu0
          %v706 = vld [vmem:[%s333] sm:$0x1]
          %708 = vset.pattern.permute.xlu0 0
          %709 = vperm.xlu0 %708, %v693
          %v710 = vpop.permute.xlu0 %709
          %713 = vset.pattern.permute.xlu0 0
          %714 = vperm.xlu0 %713, %v698
          %v715 = vpop.permute.xlu0 %714
          %718 = vset.pattern.permute.xlu0 0
          %719 = vperm.xlu0 %718, %v703
          %v720 = vpop.permute.xlu0 %719
          %v722 = vsel %vm382, %v710, 0.0
          %v723 = vsel %vm383, %v715, 0.0
          %v724 = vsel %vm384, %v720, 0.0
          %v725 = vadd.f32 %v722, %v723
          %v726 = vadd.f32 %v725, %v724
          %v727 = vrot.slane %v726, 4
          %v728 = vadd.f32 %v726, %v727
          %v729 = vrot.slane %v728, 2
          %v730 = vadd.f32 %v728, %v729
          %v731 = vrot.slane %v730, 1
          %v732 = vadd.f32 %v730, %v731
          %v733 = vadd.f32 %v706, %v732
          %734 = vst [vmem:[%s333] sm:$0x1] %v733
        $region52: #{tpu_custom_call.1} parent=39 // pred_fallthru
          _
        %p735 = scmp.eq.s32.totalorder %s26, 1
        // Predicated region
        $region53: #{tpu_custom_call.1} parent=39 // pred_check
          %p736 = pneg %p735
        $region54: #{tpu_custom_call.1} parent=39 // pred_check_branch
          %738 = sbr.rel (%p736) target = $region56
        $region55: #{tpu_custom_call.1} parent=39 // pred_region
          %v739 = vld [vmem:[%s342] sm:$0xff]
          %v740 = vld [vmem:[%s342 + $0x8] sm:$0xff]
          %v741 = vld [vmem:[%s342 + $0x10] sm:$0xff]
          %v742 = vld [vmem:[%s358] sm:$0xff]
          %v743 = vld [vmem:[%s358 + $0x8] sm:$0xff]
          %v744 = vld [vmem:[%s362] sm:$0x1]
          %v746 = vlaneseq
          %v747 = vshrl.u32 %v746, 7
          %v748 = vsub.s32 0, %v747
          %v749 = vrot.slane %v744, %v748
          %vm751 = vcmask 130048
          %v753 = vsel %vm751, %v739, 0
          %v756 = vsel %vm751, %v740, 0
          %v759 = vsel %vm751, %v741, 0
          %761 = vmatprep.subr.mxu0 0.0
          %762 = vmatpush1.msra.mxu0 %v742
          %763 = vmatprep.subr.mxu0 0.0
          %764 = vmatpush1.msra.mxu0 %v743
          %765 = vmatprep.subr.mxu0 0.0
          %766 = vmatpush1.msra.mxu0 0.0
          %767 = vmatprep.subr.mxu0 0.0
          %768 = vmatpush1.msra.mxu0 0.0
          %769 = vmatprep.subr.mxu0 0.0
          %770 = vmatpush1.msra.mxu0 0.0
          %771 = vmatprep.subr.mxu0 0.0
          %772 = vmatpush1.msra.mxu0 0.0
          %773 = vmatprep.subr.mxu0 0.0
          %774 = vmatpush1.msra.mxu0 0.0
          %775 = vmatprep.subr.mxu0 0.0
          %776 = vmatpush1.msra.mxu0 0.0
          %777 = vmatprep.subr.mxu0 0.0
          %778 = vmatpush1.msra.mxu0 0.0
          %779 = vmatprep.subr.mxu0 0.0
          %780 = vmatpush1.msra.mxu0 0.0
          %781 = vmatprep.subr.mxu0 0.0
          %782 = vmatpush1.msra.mxu0 0.0
          %783 = vmatprep.subr.mxu0 0.0
          %784 = vmatpush1.msra.mxu0 0.0
          %785 = vmatprep.subr.mxu0 0.0
          %786 = vmatpush1.msra.mxu0 0.0
          %787 = vmatprep.subr.mxu0 0.0
          %788 = vmatpush1.msra.mxu0 0.0
          %789 = vmatprep.subr.mxu0 0.0
          %790 = vmatpush1.msra.mxu0 0.0
          %791 = vmatprep.subr.mxu0 0.0
          %792 = vmatpush1.msra.mxu0 0.0
          %793 = vmatprep.subr.mxu0 0.0
          %794 = vmatpush1.msra.mxu0 0.0
          %795 = vmatprep.subr.mxu0 0.0
          %796 = vmatpush1.msra.mxu0 0.0
          %797 = vmatprep.subr.mxu0 0.0
          %798 = vmatpush1.msra.mxu0 0.0
          %799 = vmatprep.subr.mxu0 0.0
          %800 = vmatpush1.msra.mxu0 0.0
          %801 = vmatprep.subr.mxu0 0.0
          %802 = vmatpush1.msra.mxu0 0.0
          %803 = vmatprep.subr.mxu0 0.0
          %804 = vmatpush1.msra.mxu0 0.0
          %805 = vmatprep.subr.mxu0 0.0
          %806 = vmatpush1.msra.mxu0 0.0
          %807 = vmatprep.subr.mxu0 0.0
          %808 = vmatpush1.msra.mxu0 0.0
          %809 = vmatprep.subr.mxu0 0.0
          %810 = vmatpush1.msra.mxu0 0.0
          %811 = vmatprep.subr.mxu0 0.0
          %812 = vmatpush1.msra.mxu0 0.0
          %813 = vmatprep.subr.mxu0 0.0
          %814 = vmatpush1.msra.mxu0 0.0
          %815 = vmatprep.subr.mxu0 0.0
          %816 = vmatpush1.msra.mxu0 0.0
          %817 = vmatprep.subr.mxu0 0.0
          %818 = vmatpush1.msra.mxu0 0.0
          %819 = vmatprep.subr.mxu0 0.0
          %820 = vmatpush1.msra.mxu0 0.0
          %821 = vmatprep.subr.mxu0 0.0
          %822 = vmatpush1.msra.mxu0 0.0
          %823 = vmatprep.subr.mxu0 0.0
          %824 = vmatpush1.msra.mxu0 0.0
          %825 = vmatprep.mubr.f32.mxu0 0.0
          %826 = vmatmul.mubr.f32.gmra.mrb[0].mxu0 %v753
          %v827 = vpop.f32.mrb[0].mxu0
          %v828 = vadd.f32 %v749, %v827
          %v829 = vpop.f32.mrb[0].mxu0
          %830 = vmatprep.mubr.f32.mxu0 0.0
          %831 = vmatmul.mubr.f32.gmra.mrb[0].mxu0 %v756
          %v832 = vpop.f32.mrb[0].mxu0
          %v833 = vadd.f32 %v749, %v832
          %v834 = vpop.f32.mrb[0].mxu0
          %835 = vmatprep.mubr.f32.mxu0 0.0
          %836 = vmatmul.mubr.f32.gmra.mrb[0].mxu0 %v759
          %v837 = vpop.f32.mrb[0].mxu0
          %v838 = vadd.f32 %v749, %v837
          %v839 = vpop.f32.mrb[0].mxu0
          %840 = vdwg.mxu0
          %v841 = vxor.u32 %v828, 2147483648
          %v842 = vxor.u32 %v833, 2147483648
          %v843 = vxor.u32 %v838, 2147483648
          %v844 = vmul.f32 %v841, 1.442695
          %v845 = vpow.pop %v844
          %v846 = vmul.f32 %v842, 1.442695
          %v847 = vpow.pop %v846
          %v848 = vmul.f32 %v843, 1.442695
          %v849 = vpow.pop %v848
          %v850 = vadd.f32 %v845, 1.0
          %v851 = vadd.f32 %v847, 1.0
          %v852 = vadd.f32 %v849, 1.0
          %v853 = vrcp.pop %v850
          %v854 = vmul.f32 1.0, %v853
          %v855 = vrcp.pop %v851
          %v856 = vmul.f32 1.0, %v855
          %v857 = vrcp.pop %v852
          %v858 = vmul.f32 1.0, %v857
          %v859 = vld [vmem:[%s281] sm:$0xff]
          %v860 = vld [vmem:[%s281 + $0x8] sm:$0xff]
          %v861 = vld [vmem:[%s281 + $0x10] sm:$0xff]
          %v862 = vld [vmem:[%s281 + $0x18] sm:$0xff]
          %v863 = vld [vmem:[%s281 + $0x20] sm:$0xff]
          %v864 = vld [vmem:[%s281 + $0x28] sm:$0xff]
          %v865 = vld [vmem:[%s281 + $0x30] sm:$0xff]
          %v866 = vld [vmem:[%s281 + $0x38] sm:$0xff]
          %v867 = vld [vmem:[%s281 + $0x40] sm:$0xff]
          %v868 = vld [vmem:[%s281 + $0x48] sm:$0xff]
          %v869 = vld [vmem:[%s281 + $0x50] sm:$0xff]
          %v870 = vld [vmem:[%s281 + $0x58] sm:$0xff]
          %v871 = vld [vmem:[%s281 + $0x60] sm:$0xff]
          %v872 = vld [vmem:[%s281 + $0x68] sm:$0xff]
          %v873 = vld [vmem:[%s281 + $0x70] sm:$0xff]
          %v874 = vld [vmem:[%s281 + $0x78] sm:$0xff]
          %s875 = scalar_lea.vmem %s362, 1
          %v876 = vld [vmem:[%s875] sm:$0x1]
          %v878 = vlaneseq
          %v879 = vshrl.u32 %v878, 7
          %v880 = vsub.s32 0, %v879
          %v881 = vrot.slane %v876, %v880
          %883 = vmatprep.subr.mxu0 0.0
          %884 = vmatpush1.msra.mxu0 %v859
          %885 = vmatprep.subr.mxu0 0.0
          %886 = vmatpush1.msra.mxu0 %v860
          %887 = vmatprep.subr.mxu0 0.0
          %888 = vmatpush1.msra.mxu0 %v861
          %889 = vmatprep.subr.mxu0 0.0
          %890 = vmatpush1.msra.mxu0 %v862
          %891 = vmatprep.subr.mxu0 0.0
          %892 = vmatpush1.msra.mxu0 %v863
          %893 = vmatprep.subr.mxu0 0.0
          %894 = vmatpush1.msra.mxu0 %v864
          %895 = vmatprep.subr.mxu0 0.0
          %896 = vmatpush1.msra.mxu0 %v865
          %897 = vmatprep.subr.mxu0 0.0
          %898 = vmatpush1.msra.mxu0 %v866
          %899 = vmatprep.subr.mxu0 0.0
          %900 = vmatpush1.msra.mxu0 %v867
          %901 = vmatprep.subr.mxu0 0.0
          %902 = vmatpush1.msra.mxu0 %v868
          %903 = vmatprep.subr.mxu0 0.0
          %904 = vmatpush1.msra.mxu0 %v869
          %905 = vmatprep.subr.mxu0 0.0
          %906 = vmatpush1.msra.mxu0 %v870
          %907 = vmatprep.subr.mxu0 0.0
          %908 = vmatpush1.msra.mxu0 %v871
          %909 = vmatprep.subr.mxu0 0.0
          %910 = vmatpush1.msra.mxu0 %v872
          %911 = vmatprep.subr.mxu0 0.0
          %912 = vmatpush1.msra.mxu0 %v873
          %913 = vmatprep.subr.mxu0 0.0
          %914 = vmatpush1.msra.mxu0 %v874
          %915 = vmatprep.subr.mxu0 0.0
          %916 = vmatpush1.msra.mxu0 0.0
          %917 = vmatprep.subr.mxu0 0.0
          %918 = vmatpush1.msra.mxu0 0.0
          %919 = vmatprep.subr.mxu0 0.0
          %920 = vmatpush1.msra.mxu0 0.0
          %921 = vmatprep.subr.mxu0 0.0
          %922 = vmatpush1.msra.mxu0 0.0
          %923 = vmatprep.subr.mxu0 0.0
          %924 = vmatpush1.msra.mxu0 0.0
          %925 = vmatprep.subr.mxu0 0.0
          %926 = vmatpush1.msra.mxu0 0.0
          %927 = vmatprep.subr.mxu0 0.0
          %928 = vmatpush1.msra.mxu0 0.0
          %929 = vmatprep.subr.mxu0 0.0
          %930 = vmatpush1.msra.mxu0 0.0
          %931 = vmatprep.subr.mxu0 0.0
          %932 = vmatpush1.msra.mxu0 0.0
          %933 = vmatprep.subr.mxu0 0.0
          %934 = vmatpush1.msra.mxu0 0.0
          %935 = vmatprep.subr.mxu0 0.0
          %936 = vmatpush1.msra.mxu0 0.0
          %937 = vmatprep.subr.mxu0 0.0
          %938 = vmatpush1.msra.mxu0 0.0
          %939 = vmatprep.subr.mxu0 0.0
          %940 = vmatpush1.msra.mxu0 0.0
          %941 = vmatprep.subr.mxu0 0.0
          %942 = vmatpush1.msra.mxu0 0.0
          %943 = vmatprep.subr.mxu0 0.0
          %944 = vmatpush1.msra.mxu0 0.0
          %945 = vmatprep.subr.mxu0 0.0
          %946 = vmatpush1.msra.mxu0 0.0
          %947 = vmatprep.mubr.f32.mxu0 0.0
          %948 = vmatmul.mubr.f32.gmra.mrb[0].mxu0 %v854
          %v949 = vpop.f32.mrb[0].mxu0
          %v950 = vadd.f32 %v881, %v949
          %v951 = vpop.f32.mrb[0].mxu0
          %952 = vmatprep.mubr.f32.mxu0 0.0
          %953 = vmatmul.mubr.f32.gmra.mrb[0].mxu0 %v856
          %v954 = vpop.f32.mrb[0].mxu0
          %v955 = vadd.f32 %v881, %v954
          %v956 = vpop.f32.mrb[0].mxu0
          %957 = vmatprep.mubr.f32.mxu0 0.0
          %958 = vmatmul.mubr.f32.gmra.mrb[0].mxu0 %v858
          %v959 = vpop.f32.mrb[0].mxu0
          %v960 = vadd.f32 %v881, %v959
          %v961 = vpop.f32.mrb[0].mxu0
          %962 = vdwg.mxu0
          %v963 = vtanh.pop %v950
          %v964 = vtanh.pop %v955
          %v965 = vtanh.pop %v960
          %s966 = scalar_lea.vmem %s281, 128 [#allocation2]
          %v967 = vld [vmem:[%s966] sm:$0xff]
          %v968 = vld [vmem:[%s966 + $0x8] sm:$0xff]
          %v969 = vld [vmem:[%s966 + $0x10] sm:$0xff]
          %v970 = vld [vmem:[%s966 + $0x18] sm:$0xff]
          %v971 = vld [vmem:[%s966 + $0x20] sm:$0xff]
          %v972 = vld [vmem:[%s966 + $0x28] sm:$0xff]
          %v973 = vld [vmem:[%s966 + $0x30] sm:$0xff]
          %v974 = vld [vmem:[%s966 + $0x38] sm:$0xff]
          %v975 = vld [vmem:[%s966 + $0x40] sm:$0xff]
          %v976 = vld [vmem:[%s966 + $0x48] sm:$0xff]
          %v977 = vld [vmem:[%s966 + $0x50] sm:$0xff]
          %v978 = vld [vmem:[%s966 + $0x58] sm:$0xff]
          %v979 = vld [vmem:[%s966 + $0x60] sm:$0xff]
          %v980 = vld [vmem:[%s966 + $0x68] sm:$0xff]
          %v981 = vld [vmem:[%s966 + $0x70] sm:$0xff]
          %v982 = vld [vmem:[%s966 + $0x78] sm:$0xff]
          %s983 = scalar_lea.vmem %s362, 2
          %v984 = vld [vmem:[%s983] sm:$0x1]
          %v986 = vlaneseq
          %v987 = vshrl.u32 %v986, 7
          %v988 = vsub.s32 0, %v987
          %v989 = vrot.slane %v984, %v988
          %991 = vmatprep.subr.mxu0 0.0
          %992 = vmatpush1.msra.mxu0 %v967
          %993 = vmatprep.subr.mxu0 0.0
          %994 = vmatpush1.msra.mxu0 %v968
          %995 = vmatprep.subr.mxu0 0.0
          %996 = vmatpush1.msra.mxu0 %v969
          %997 = vmatprep.subr.mxu0 0.0
          %998 = vmatpush1.msra.mxu0 %v970
          %999 = vmatprep.subr.mxu0 0.0
          %1000 = vmatpush1.msra.mxu0 %v971
          %1001 = vmatprep.subr.mxu0 0.0
          %1002 = vmatpush1.msra.mxu0 %v972
          %1003 = vmatprep.subr.mxu0 0.0
          %1004 = vmatpush1.msra.mxu0 %v973
          %1005 = vmatprep.subr.mxu0 0.0
          %1006 = vmatpush1.msra.mxu0 %v974
          %1007 = vmatprep.subr.mxu0 0.0
          %1008 = vmatpush1.msra.mxu0 %v975
          %1009 = vmatprep.subr.mxu0 0.0
          %1010 = vmatpush1.msra.mxu0 %v976
          %1011 = vmatprep.subr.mxu0 0.0
          %1012 = vmatpush1.msra.mxu0 %v977
          %1013 = vmatprep.subr.mxu0 0.0
          %1014 = vmatpush1.msra.mxu0 %v978
          %1015 = vmatprep.subr.mxu0 0.0
          %1016 = vmatpush1.msra.mxu0 %v979
          %1017 = vmatprep.subr.mxu0 0.0
          %1018 = vmatpush1.msra.mxu0 %v980
          %1019 = vmatprep.subr.mxu0 0.0
          %1020 = vmatpush1.msra.mxu0 %v981
          %1021 = vmatprep.subr.mxu0 0.0
          %1022 = vmatpush1.msra.mxu0 %v982
          %1023 = vmatprep.subr.mxu0 0.0
          %1024 = vmatpush1.msra.mxu0 0.0
          %1025 = vmatprep.subr.mxu0 0.0
          %1026 = vmatpush1.msra.mxu0 0.0
          %1027 = vmatprep.subr.mxu0 0.0
          %1028 = vmatpush1.msra.mxu0 0.0
          %1029 = vmatprep.subr.mxu0 0.0
          %1030 = vmatpush1.msra.mxu0 0.0
          %1031 = vmatprep.subr.mxu0 0.0
          %1032 = vmatpush1.msra.mxu0 0.0
          %1033 = vmatprep.subr.mxu0 0.0
          %1034 = vmatpush1.msra.mxu0 0.0
          %1035 = vmatprep.subr.mxu0 0.0
          %1036 = vmatpush1.msra.mxu0 0.0
          %1037 = vmatprep.subr.mxu0 0.0
          %1038 = vmatpush1.msra.mxu0 0.0
          %1039 = vmatprep.subr.mxu0 0.0
          %1040 = vmatpush1.msra.mxu0 0.0
          %1041 = vmatprep.subr.mxu0 0.0
          %1042 = vmatpush1.msra.mxu0 0.0
          %1043 = vmatprep.subr.mxu0 0.0
          %1044 = vmatpush1.msra.mxu0 0.0
          %1045 = vmatprep.subr.mxu0 0.0
          %1046 = vmatpush1.msra.mxu0 0.0
          %1047 = vmatprep.subr.mxu0 0.0
          %1048 = vmatpush1.msra.mxu0 0.0
          %1049 = vmatprep.subr.mxu0 0.0
          %1050 = vmatpush1.msra.mxu0 0.0
          %1051 = vmatprep.subr.mxu0 0.0
          %1052 = vmatpush1.msra.mxu0 0.0
          %1053 = vmatprep.subr.mxu0 0.0
          %1054 = vmatpush1.msra.mxu0 0.0
          %1055 = vmatprep.mubr.f32.mxu0 0.0
          %1056 = vmatmul.mubr.f32.gmra.mrb[0].mxu0 %v963
          %v1057 = vpop.f32.mrb[0].mxu0
          %v1058 = vadd.f32 %v989, %v1057
          %v1059 = vpop.f32.mrb[0].mxu0
          %1060 = vmatprep.mubr.f32.mxu0 0.0
          %1061 = vmatmul.mubr.f32.gmra.mrb[0].mxu0 %v964
          %v1062 = vpop.f32.mrb[0].mxu0
          %v1063 = vadd.f32 %v989, %v1062
          %v1064 = vpop.f32.mrb[0].mxu0
          %1065 = vmatprep.mubr.f32.mxu0 0.0
          %1066 = vmatmul.mubr.f32.gmra.mrb[0].mxu0 %v965
          %v1067 = vpop.f32.mrb[0].mxu0
          %v1068 = vadd.f32 %v989, %v1067
          %v1069 = vpop.f32.mrb[0].mxu0
          %1070 = vdwg.mxu0
          %v1071 = vld [vmem:[%s333] sm:$0x1]
          %1073 = vset.pattern.permute.xlu0 0
          %1074 = vperm.xlu0 %1073, %v1058
          %v1075 = vpop.permute.xlu0 %1074
          %1078 = vset.pattern.permute.xlu0 0
          %1079 = vperm.xlu0 %1078, %v1063
          %v1080 = vpop.permute.xlu0 %1079
          %1083 = vset.pattern.permute.xlu0 0
          %1084 = vperm.xlu0 %1083, %v1068
          %v1085 = vpop.permute.xlu0 %1084
          %v1087 = vsel %vm382, %v1075, 0.0
          %v1088 = vsel %vm383, %v1080, 0.0
          %v1089 = vsel %vm384, %v1085, 0.0
          %v1090 = vadd.f32 %v1087, %v1088
          %v1091 = vadd.f32 %v1090, %v1089
          %v1092 = vrot.slane %v1091, 4
          %v1093 = vadd.f32 %v1091, %v1092
          %v1094 = vrot.slane %v1093, 2
          %v1095 = vadd.f32 %v1093, %v1094
          %v1096 = vrot.slane %v1095, 1
          %v1097 = vadd.f32 %v1095, %v1096
          %v1098 = vadd.f32 %v1071, %v1097
          %1099 = vst [vmem:[%s333] sm:$0x1] %v1098
        $region56: #{tpu_custom_call.1} parent=39 // pred_fallthru
          _
        %s1100 = sand.u32 %s176, 1
        %s1101 = scalar_lea.sflag [#allocation4], %s1100
        %s1102 = sand.u32 %s176, 1
        %s1103 = scalar_lea.vmem [#allocation5], %s1102
        // Predicated region
        $region57: #{tpu_custom_call.1} parent=39 // pred_check
          %p1104 = pneg %p186
        $region58: #{tpu_custom_call.1} parent=39 // pred_check_branch
          %1106 = sbr.rel (%p1104) target = $region60
        $region59: #{tpu_custom_call.1} parent=39 // pred_region
          %s1108 = ssub.s32 16, 16
          %1109 = vsyncadd %s1101, %s1108
          %s1110 = smul.addr %s26, 16
          %s1111 = scalar_lea.hbm %s5, %s1110
          %s1113 = sshll.u32 %s1103, 4
          %s1114 = int_to_ptr.vmem [resolvable:$true] %s1113
          %1116 = dma.vmem_to_hbm [thread:$0]  %s1114, 16, %s1111, %s1101
        $region60: #{tpu_custom_call.1} parent=39 // pred_fallthru
          _
      $region40: #{tpu_custom_call.1} parent=5 // pred_fallthru
        _
      %p1117 = scmp.le.s32.totalorder 2, %s17
      // Predicated region
      $region61: #{tpu_custom_call.1} parent=5 // pred_check
        %p1118 = pneg %p1117
      $region62: #{tpu_custom_call.1} parent=5 // pred_check_branch
        %1120 = sbr.rel (%p1118) target = $region64
      $region63: #{tpu_custom_call.1} parent=5 // pred_region
        %s1121 = ssub.s32 %s17, 2
        // Predicated region
        $region65: #{tpu_custom_call.1} parent=63 // pred_check
          %p1122 = pneg %p192
        $region66: #{tpu_custom_call.1} parent=63 // pred_check_branch
          %1124 = sbr.rel (%p1122) target = $region68
        $region67: #{tpu_custom_call.1} parent=63 // pred_region
          %s1125 = sand.u32 %s177, 1
          %s1126 = scalar_lea.sflag [#allocation4], %s1125
          %s1127 = sand.u32 %s177, 1
          %s1128 = scalar_lea.vmem [#allocation5], %s1127
          %1129 = dma.done %s1126, 16
        $region68: #{tpu_custom_call.1} parent=63 // pred_fallthru
          _
      $region64: #{tpu_custom_call.1} parent=5 // pred_fallthru
        _
    $region6: #{tpu_custom_call.1} parent=1 // loop_footer
      %s21 = sadd.s32 1, %s17
    $region7: #{tpu_custom_call.1} parent=1 // loop_footer_branch
      %16 = sbr.rel target = $region3
    $region8: #{tpu_custom_call.1} parent=1 // loop_exit
      _
    %1130 = vsyncpa [#allocation3], 1
    %s1131 = scalar_lea.sflag [#allocation3], 1
    %1132 = vsyncpa %s1131, 1
    %1133 = vsyncpa [#allocation4], 1
    %s1134 = scalar_lea.sflag [#allocation4], 1
    %1135 = vsyncpa %s1134, 1

</llo_original>
